<compile_context>
chip_gen: v7x
topology: tpu7x:2x2x1
jax: 0.10.0
libtpu: 0.0.40
codegen_flags: <defaults>
</compile_context>

<pallas_src>
import functools

import jax
import jax.numpy as jnp
import numpy as np
from jax.experimental import pallas as pl
from jax.experimental.pallas import tpu as pltpu

# Hyper-parameters (would come from `args` in the PyTorch module).
M_POS = 2.5
M_NEG = 0.5
GAMMA = 2.0

_SUBLANE_BY_ITEMSIZE = {1: 32, 2: 16, 4: 8}


def _round_up(a, b):
    return -(-a // b) * b


def _ranking_loss_kernel(logit_ref, target_ref, out_ref, *,
                         n_valid, tile_rows, blocks_per_part,
                         m_pos, m_neg, gamma):
    p = pl.program_id(0)      # 'parallel' part (TensorCore shard on v7x)
    i = pl.program_id(1)      # 'arbitrary' row-block reduction step

    @pl.when(i == 0)
    def _init():
        out_ref[...] = jnp.zeros_like(out_ref)

    x = logit_ref[...]                         # (tile_rows, C), input dtype
    tgt = target_ref[...]                      # (tile_rows, 1) int32
    C = x.shape[1]

    cls = jax.lax.broadcasted_iota(jnp.int32, x.shape, 1)

    # logit[row, target[row]] as a masked lane-axis sum (exactly one hit/row).
    tgt_logit = jnp.sum(jnp.where(cls == tgt, x, 0.0), axis=1, keepdims=True)

    # top-2 over classes with exact torch.topk tie semantics:
    #   max1 = largest value; max2 = 2nd largest counted with multiplicity
    #   (== max1 whenever the maximum is tied).
    max1 = jnp.max(x, axis=1, keepdims=True)
    eq_max = x == max1
    n_max = jnp.sum(eq_max.astype(jnp.float32), axis=1, keepdims=True)
    fmin = float(jnp.finfo(x.dtype).min)
    masked_max = jnp.max(jnp.where(eq_max, fmin, x), axis=1, keepdims=True)

    # Upcast only the per-row values for the transcendentals.
    t = tgt_logit.astype(jnp.float32)
    m1 = max1.astype(jnp.float32)
    m2 = jnp.where(n_max > 1.5, m1, masked_max.astype(jnp.float32))

    # Equivalent to (top-1 index == target): on ties either branch selects the
    # same value because max2 == max1.
    pred_t = t == m1
    none_other = (tgt != 0).astype(jnp.float32)

    part1 = (jnp.log(1.0 + jnp.exp(gamma * (m_pos - t)))
             + jnp.log(1.0 + jnp.exp(gamma * (t - 100.0))))
    v2 = jnp.where(pred_t, m2, m1)
    part2 = (jnp.log(1.0 + jnp.exp(gamma * (m_neg + v2)))
             + jnp.log(1.0 + jnp.exp(gamma * (-100.0 - v2))))

    # Mask rows past the true batch (ragged last block / clamped OOB steps).
    blk = p * blocks_per_part + i
    row = blk * tile_rows + jax.lax.broadcasted_iota(
        jnp.int32, (tile_rows, 1), 0)
    contrib = none_other * part1 + part2
    out_ref[...] += jnp.where(row < n_valid, contrib, 0.0)


def _pick_config(N, C, itemsize):
    """Generation-aware tiling.

    Returns (tile_rows, num_parts, blocks_per_part, total_blocks, vmem_limit).
    """
    kind = ""
    try:
        kind = jax.devices()[0].device_kind.lower()
    except Exception:
        pass
    if "v7" in kind:              # 2 TensorCores / chip, 64 MiB VMEM per core
        parts_pref, vmem_limit, stream_cap = 2, 32 << 20, 12 << 20
    elif "v5" in kind or "v6" in kind:   # 1 TensorCore, 128 MiB VMEM
        parts_pref, vmem_limit, stream_cap = 1, 64 << 20, 24 << 20
    else:                         # unknown hardware: conservative defaults
        parts_pref, vmem_limit, stream_cap = 1, None, 6 << 20

    sub = _SUBLANE_BY_ITEMSIZE.get(itemsize, 8)
    # Per-row VMEM footprint of one block: double-buffered logit stream plus
    # ~4 f32/i32-sized elementwise temporaries (iota / compares / selects),
    # plus the int32 target row and the f32 accumulator row.
    per_row = C * (2 * itemsize + 16) + 12
    tile_rows = max(sub, (stream_cap // per_row) // sub * sub)
    tile_rows = min(tile_rows, _round_up(N, sub))
    # TODO(synk): for extremely large C a full class row may not fit VMEM;
    # that case would need an additional class-axis tiling loop (running
    # top-2 / target carry in scratch).  Very small C (< ~16) would prefer a
    # class-major layout for lane density.

    total_blocks = -(-N // tile_rows)
    num_parts = max(1, min(parts_pref, total_blocks))
    blocks_per_part = -(-total_blocks // num_parts)
    return tile_rows, num_parts, blocks_per_part, total_blocks, vmem_limit


def _ranking_loss_impl(logit, target):
    """logit: (N, C) float (f32/bf16), target: (N,) int -> scalar f32 loss."""
    N, C = logit.shape
    itemsize = jnp.dtype(logit.dtype).itemsize
    tile_rows, num_parts, bpp, total_blocks, vmem_limit = _pick_config(
        N, C, itemsize)
    last_blk = total_blocks - 1

    kernel = functools.partial(
        _ranking_loss_kernel, n_valid=N, tile_rows=tile_rows,
        blocks_per_part=bpp, m_pos=M_POS, m_neg=M_NEG, gamma=GAMMA)

    def row_block(p, i):
        # With a ceil-split of blocks across parts the last part may step past
        # the final row block; clamp (those steps are fully masked in-kernel).
        return jnp.minimum(p * bpp + i, last_blk)

    compiler_kwargs = dict(dimension_semantics=("parallel", "arbitrary"))
    if vmem_limit is not None:
        compiler_kwargs["vmem_limit_bytes"] = vmem_limit

    partial_sums = pl.pallas_call(
        kernel,
        out_shape=jax.ShapeDtypeStruct((num_parts * tile_rows, 1),
                                       jnp.float32),
        grid=(num_parts, bpp),
        in_specs=[
            pl.BlockSpec((tile_rows, C), lambda p, i: (row_block(p, i), 0)),
            pl.BlockSpec((tile_rows, 1), lambda p, i: (row_block(p, i), 0)),
        ],
        out_specs=pl.BlockSpec((tile_rows, 1), lambda p, i: (p, 0)),
        compiler_params=pltpu.CompilerParams(**compiler_kwargs),
    )(logit, target.astype(jnp.int32).reshape(N, 1))

    return jnp.sum(partial_sums) / jnp.float32(N)


ranking_loss = jax.jit(_ranking_loss_impl)


def _ranking_loss_ref(logit, target):
    """Pure-JAX reference mirroring the PyTorch forward exactly."""
    N = logit.shape[0]
    logit = logit.astype(jnp.float32)
    val1 = jnp.max(logit, axis=1)
    ind1 = jnp.argmax(logit, axis=1)
    masked = logit.at[jnp.arange(N), ind1].set(-jnp.inf)
    val2 = jnp.max(masked, axis=1)
    part1 = logit[jnp.arange(N), target]
    part1 = (jnp.log(1 + jnp.exp(GAMMA * (M_POS - part1)))
             + jnp.log(1 + jnp.exp(GAMMA * (-100.0 + part1))))
    pred_t = (ind1 == target).astype(jnp.float32)
    pred_f = 1.0 - pred_t

    def p2(v):
        return (jnp.log(1 + jnp.exp(GAMMA * (M_NEG + v)))
                + jnp.log(1 + jnp.exp(GAMMA * (-100.0 - v))))

    part2 = jnp.dot(pred_t, p2(val2)) + jnp.dot(pred_f, p2(val1))
    none_other = (target != 0).astype(jnp.float32)
    loss = jnp.dot(none_other, part1) + part2
    return loss / N


if __name__ == "__main__":
    key = jax.random.PRNGKey(0)
    k1, k2 = jax.random.split(key)
    N, C = 8, 32                       # batch=8, num_classes=32
    logit = jax.random.normal(k1, (N, C), dtype=jnp.float32) * 3.0
    target = jax.random.randint(k2, (N,), 0, C, dtype=jnp.int32)

    loss = ranking_loss(logit, target)
    jax.block_until_ready(loss)

    ref = _ranking_loss_ref(logit, target)
    assert np.allclose(np.asarray(loss), np.asarray(ref), rtol=1e-4, atol=1e-4), (
        float(loss), float(ref))
    print("KERNEL_OK")
</pallas_src>

<mosaic_0001>
module attributes {stable_mosaic.version = 11 : i64} {
  func.func @_ranking_loss_kernel(%arg0: i32, %arg1: i32, %arg2: memref<8x32xf32, #tpu.memory_space<vmem>>, %arg3: memref<8x1xi32, #tpu.memory_space<vmem>>, %arg4: memref<8x1xf32, #tpu.memory_space<vmem>>) attributes {dimension_semantics = [#tpu.dimension_semantics<parallel>, #tpu.dimension_semantics<arbitrary>], iteration_bounds = array<i64: 1, 1>, scalar_prefetch = 0 : i64, scratch_operands = 0 : i64, tpu.core_type = #tpu.core_type<tc>, window_params = [{transform_indices = @transform_0, window_bounds = array<i64: 8, 32>}, {transform_indices = @transform_1, window_bounds = array<i64: 8, 1>}, {transform_indices = @transform_2, window_bounds = array<i64: 8, 1>}]} {
    %c0_i32 = arith.constant 0 : i32
    %0 = arith.cmpi eq, %arg1, %c0_i32 : i32
    %1 = arith.extui %0 : i1 to i32
    %c0_i32_0 = arith.constant 0 : i32
    %2 = arith.cmpi ne, %1, %c0_i32_0 : i32
    scf.if %2 {
      %cst_29 = arith.constant 0.000000e+00 : f32
      %82 = vector.broadcast %cst_29 : f32 to vector<8x1xf32>
      %c0_30 = arith.constant 0 : index
      %c0_31 = arith.constant 0 : index
      %83 = vector.load %arg4[%c0_30, %c0_31] : memref<8x1xf32, #tpu.memory_space<vmem>>, vector<8x1xf32>
      tpu.vector_store %arg4[%c0_30, %c0_31], %82 {strides = array<i32>} : memref<8x1xf32, #tpu.memory_space<vmem>>, vector<8x1xf32>,
    } else {
    }
    %c0 = arith.constant 0 : index
    %c0_1 = arith.constant 0 : index
    %3 = vector.load %arg2[%c0, %c0_1] : memref<8x32xf32, #tpu.memory_space<vmem>>, vector<8x32xf32>
    %c0_2 = arith.constant 0 : index
    %c0_3 = arith.constant 0 : index
    %4 = vector.load %arg3[%c0_2, %c0_3] : memref<8x1xi32, #tpu.memory_space<vmem>>, vector<8x1xi32>
    %5 = tpu.iota {dimensions = array<i32: 1>} : vector<8x32xi32>
    %6 = vector.broadcast %4 : vector<8x1xi32> to vector<8x32xi32>
    %7 = arith.cmpi eq, %5, %6 : vector<8x32xi32>
    %cst = arith.constant 0.000000e+00 : f32
    %8 = vector.broadcast %cst : f32 to vector<8x32xf32>
    %9 = arith.select %7, %3, %8 : vector<8x32xi1>, vector<8x32xf32>
    %cst_4 = arith.constant dense<0.000000e+00> : vector<8xf32>
    %10 = vector.multi_reduction <add>, %9, %cst_4 [1] : vector<8x32xf32> to vector<8xf32>
    %11 = vector.shape_cast %10 : vector<8xf32> to vector<8x1xf32>
    %cst_5 = arith.constant dense<0xFF800000> : vector<8xf32>
    %12 = vector.multi_reduction <maximumf>, %3, %cst_5 [1] : vector<8x32xf32> to vector<8xf32>
    %13 = vector.shape_cast %12 : vector<8xf32> to vector<8x1xf32>
    %14 = vector.broadcast %13 : vector<8x1xf32> to vector<8x32xf32>
    %15 = arith.cmpf oeq, %3, %14 : vector<8x32xf32>
    %16 = arith.extui %15 : vector<8x32xi1> to vector<8x32xi32>
    %17 = arith.sitofp %16 : vector<8x32xi32> to vector<8x32xf32>
    %cst_6 = arith.constant dense<0.000000e+00> : vector<8xf32>
    %18 = vector.multi_reduction <add>, %17, %cst_6 [1] : vector<8x32xf32> to vector<8xf32>
    %19 = vector.shape_cast %18 : vector<8xf32> to vector<8x1xf32>
    %cst_7 = arith.constant -3.40282347E+38 : f32
    %20 = vector.broadcast %cst_7 : f32 to vector<8x32xf32>
    %21 = arith.select %15, %20, %3 : vector<8x32xi1>, vector<8x32xf32>
    %cst_8 = arith.constant dense<0xFF800000> : vector<8xf32>
    %22 = vector.multi_reduction <maximumf>, %21, %cst_8 [1] : vector<8x32xf32> to vector<8xf32>
    %23 = vector.shape_cast %22 : vector<8xf32> to vector<8x1xf32>
    %cst_9 = arith.constant 1.500000e+00 : f32
    %24 = vector.broadcast %cst_9 : f32 to vector<8x1xf32>
    %25 = arith.cmpf ogt, %19, %24 : vector<8x1xf32>
    %26 = arith.select %25, %13, %23 : vector<8x1xi1>, vector<8x1xf32>
    %27 = arith.cmpf oeq, %11, %13 : vector<8x1xf32>
    %c0_i32_10 = arith.constant 0 : i32
    %28 = vector.broadcast %c0_i32_10 : i32 to vector<8x1xi32>
    %29 = arith.cmpi ne, %4, %28 : vector<8x1xi32>
    %30 = arith.extui %29 : vector<8x1xi1> to vector<8x1xi32>
    %31 = arith.sitofp %30 : vector<8x1xi32> to vector<8x1xf32>
    %cst_11 = arith.constant 2.500000e+00 : f32
    %32 = vector.broadcast %cst_11 : f32 to vector<8x1xf32>
    %33 = arith.subf %32, %11 : vector<8x1xf32>
    %cst_12 = arith.constant 2.000000e+00 : f32
    %34 = vector.broadcast %cst_12 : f32 to vector<8x1xf32>
    %35 = arith.mulf %34, %33 : vector<8x1xf32>
    %36 = math.exp %35 : vector<8x1xf32>
    %cst_13 = arith.constant 1.000000e+00 : f32
    %37 = vector.broadcast %cst_13 : f32 to vector<8x1xf32>
    %38 = arith.addf %37, %36 : vector<8x1xf32>
    %39 = math.log %38 : vector<8x1xf32>
    %cst_14 = arith.constant 1.000000e+02 : f32
    %40 = vector.broadcast %cst_14 : f32 to vector<8x1xf32>
    %41 = arith.subf %11, %40 : vector<8x1xf32>
    %cst_15 = arith.constant 2.000000e+00 : f32
    %42 = vector.broadcast %cst_15 : f32 to vector<8x1xf32>
    %43 = arith.mulf %42, %41 : vector<8x1xf32>
    %44 = math.exp %43 : vector<8x1xf32>
    %cst_16 = arith.constant 1.000000e+00 : f32
    %45 = vector.broadcast %cst_16 : f32 to vector<8x1xf32>
    %46 = arith.addf %45, %44 : vector<8x1xf32>
    %47 = math.log %46 : vector<8x1xf32>
    %48 = arith.addf %39, %47 : vector<8x1xf32>
    %49 = arith.select %27, %26, %13 : vector<8x1xi1>, vector<8x1xf32>
    %cst_17 = arith.constant 5.000000e-01 : f32
    %50 = vector.broadcast %cst_17 : f32 to vector<8x1xf32>
    %51 = arith.addf %50, %49 : vector<8x1xf32>
    %cst_18 = arith.constant 2.000000e+00 : f32
    %52 = vector.broadcast %cst_18 : f32 to vector<8x1xf32>
    %53 = arith.mulf %52, %51 : vector<8x1xf32>
    %54 = math.exp %53 : vector<8x1xf32>
    %cst_19 = arith.constant 1.000000e+00 : f32
    %55 = vector.broadcast %cst_19 : f32 to vector<8x1xf32>
    %56 = arith.addf %55, %54 : vector<8x1xf32>
    %57 = math.log %56 : vector<8x1xf32>
    %cst_20 = arith.constant -1.000000e+02 : f32
    %58 = vector.broadcast %cst_20 : f32 to vector<8x1xf32>
    %59 = arith.subf %58, %49 : vector<8x1xf32>
    %cst_21 = arith.constant 2.000000e+00 : f32
    %60 = vector.broadcast %cst_21 : f32 to vector<8x1xf32>
    %61 = arith.mulf %60, %59 : vector<8x1xf32>
    %62 = math.exp %61 : vector<8x1xf32>
    %cst_22 = arith.constant 1.000000e+00 : f32
    %63 = vector.broadcast %cst_22 : f32 to vector<8x1xf32>
    %64 = arith.addf %63, %62 : vector<8x1xf32>
    %65 = math.log %64 : vector<8x1xf32>
    %66 = arith.addf %57, %65 : vector<8x1xf32>
    %c1_i32 = arith.constant 1 : i32
    %67 = arith.muli %arg0, %c1_i32 : i32
    %68 = arith.addi %67, %arg1 : i32
    %c8_i32 = arith.constant 8 : i32
    %69 = arith.muli %68, %c8_i32 : i32
    %70 = tpu.iota {dimensions = array<i32: 0>} : vector<8x1xi32>
    %71 = vector.broadcast %69 : i32 to vector<8x1xi32>
    %72 = arith.addi %71, %70 : vector<8x1xi32>
    %73 = arith.mulf %31, %48 : vector<8x1xf32>
    %74 = arith.addf %73, %66 : vector<8x1xf32>
    %c0_23 = arith.constant 0 : index
    %c0_24 = arith.constant 0 : index
    %75 = vector.load %arg4[%c0_23, %c0_24] : memref<8x1xf32, #tpu.memory_space<vmem>>, vector<8x1xf32>
    %c8_i32_25 = arith.constant 8 : i32
    %76 = vector.broadcast %c8_i32_25 : i32 to vector<8x1xi32>
    %77 = arith.cmpi slt, %72, %76 : vector<8x1xi32>
    %cst_26 = arith.constant 0.000000e+00 : f32
    %78 = vector.broadcast %cst_26 : f32 to vector<8x1xf32>
    %79 = arith.select %77, %74, %78 : vector<8x1xi1>, vector<8x1xf32>
    %80 = arith.addf %75, %79 : vector<8x1xf32>
    %c0_27 = arith.constant 0 : index
    %c0_28 = arith.constant 0 : index
    %81 = vector.load %arg4[%c0_27, %c0_28] : memref<8x1xf32, #tpu.memory_space<vmem>>, vector<8x1xf32>
    tpu.vector_store %arg4[%c0_27, %c0_28], %80 {strides = array<i32>} : memref<8x1xf32, #tpu.memory_space<vmem>>, vector<8x1xf32>,
    return
  }
  func.func @transform_0(%arg0: i32, %arg1: i32) -> (i32, i32) {
    %c1_i32 = arith.constant 1 : i32
    %0 = arith.muli %arg0, %c1_i32 : i32
    %1 = arith.addi %0, %arg1 : i32
    %c0_i32 = arith.constant 0 : i32
    %2 = arith.minsi %1, %c0_i32 : i32
    %c0_i32_0 = arith.constant 0 : i32
    %c0_i32_1 = arith.constant 0 : i32
    return %2, %c0_i32_0 : i32, i32
  }
  func.func @transform_1(%arg0: i32, %arg1: i32) -> (i32, i32) {
    %c1_i32 = arith.constant 1 : i32
    %0 = arith.muli %arg0, %c1_i32 : i32
    %1 = arith.addi %0, %arg1 : i32
    %c0_i32 = arith.constant 0 : i32
    %2 = arith.minsi %1, %c0_i32 : i32
    %c0_i32_0 = arith.constant 0 : i32
    %c0_i32_1 = arith.constant 0 : i32
    return %2, %c0_i32_0 : i32, i32
  }
  func.func @transform_2(%arg0: i32, %arg1: i32) -> (i32, i32) {
    %c0_i32 = arith.constant 0 : i32
    %c0_i32_0 = arith.constant 0 : i32
    return %arg0, %c0_i32 : i32, i32
  }
}

</mosaic_0001>

<llo_original>
// kernel: _ranking_loss_impl.1
$region0: #{_ranking_loss_impl.1}
  #allocation0 [shape = 'u32[]', space=smem, size = 0x4, offset = 0x4, fixed_abs, tag = 'smem constant byte address 0x4 - core index']
  #allocation1 [shape = 'u32[144,128]{1,0:T(1,128)}', space=vmem, size = 0x12000, scoped, tag = 'internal scratch']
  %s0 = inlined_call_operand.vmem [shape: f32[8,32], index: 0, kind: input, shape index: {}]
  %s1 = inlined_call_operand.vmem [shape: s32[8,1], index: 1, kind: input, shape index: {}]
  %s2 = inlined_call_operand.vmem [shape: f32[8,1], index: 2, kind: output, shape index: {}]
  %s3 = sld [smem:[#allocation0]]
  $region22: #{_ranking_loss_impl.1} parent=0
    _
  %s5 = ssub.s32 1, %s3
  %s6 = scalar_select 0, %s5, %s3
  // Predicated region
  $region2: #{_ranking_loss_impl.1} parent=0 // pred_check
    _
  $region3: #{_ranking_loss_impl.1} parent=0 // pred_check_branch
    %8 = sbr.rel (0) target = $region5
  $region4: #{_ranking_loss_impl.1} parent=0 // pred_region
    %s9 = sadd.s32 0, 0
    %p10 = scmp.lt.s32.totalorder %s9, 0
    %s11 = scalar_select %p10, %s9, 0
    %p12 = scmp.lt.s32.totalorder %s11, 0
    %s13 = scalar_select %p12, %s11, 0
    %s14 = smul.addr %s13, 8
    %s15 = scalar_lea.vmem %s0, %s14
    %s16 = sadd.s32 0, 0
    %p17 = scmp.lt.s32.totalorder %s16, 0
    %s18 = scalar_select %p17, %s16, 0
  $region5: #{_ranking_loss_impl.1} parent=0 // pred_fallthru
    _
  // Predicated region
  $region6: #{_ranking_loss_impl.1} parent=0 // pred_check
    _
  $region7: #{_ranking_loss_impl.1} parent=0 // pred_check_branch
    %20 = sbr.rel (0) target = $region9
  $region8: #{_ranking_loss_impl.1} parent=0 // pred_region
    %s21 = sadd.s32 0, 0
    %p22 = scmp.lt.s32.totalorder %s21, 0
    %s23 = scalar_select %p22, %s21, 0
    %p24 = scmp.lt.s32.totalorder %s23, 0
    %s25 = scalar_select %p24, %s23, 0
    %s26 = smul.addr %s25, 8
    %s27 = scalar_lea.vmem %s1, %s26
    %s28 = sadd.s32 0, 0
    %p29 = scmp.lt.s32.totalorder %s28, 0
    %s30 = scalar_select %p29, %s28, 0
  $region9: #{_ranking_loss_impl.1} parent=0 // pred_fallthru
    _
  %s31 = sadd.s32 0, 0
  %p32 = scmp.lt.s32.totalorder %s31, 0
  %s33 = scalar_select %p32, %s31, 0
  %p34 = scmp.lt.s32.totalorder %s33, 0
  %s35 = scalar_select %p34, %s33, 0
  %s36 = smul.addr %s35, 8
  %s37 = scalar_lea.vmem %s0, %s36
  %s38 = sadd.s32 0, 0
  %p39 = scmp.lt.s32.totalorder %s38, 0
  %s40 = scalar_select %p39, %s38, 0
  %p41 = scmp.lt.s32.totalorder %s40, 0
  %s42 = scalar_select %p41, %s40, 0
  %s43 = smul.addr %s42, 8
  %s44 = scalar_lea.vmem %s1, %s43
  %s45 = sadd.s32 0, 0
  %p46 = scmp.lt.s32.totalorder %s45, 0
  %s47 = scalar_select %p46, %s45, 0
  %p48 = scmp.lt.s32.totalorder %s47, 0
  %s49 = scalar_select %p48, %s47, 0
  %s50 = smul.addr %s49, 8
  %s51 = scalar_lea.vmem %s0, %s50
  %s52 = sadd.s32 0, 0
  %p53 = scmp.lt.s32.totalorder %s52, 0
  %s54 = scalar_select %p53, %s52, 0
  %s55 = sadd.s32 0, 0
  %p56 = scmp.lt.s32.totalorder %s55, 0
  %s57 = scalar_select %p56, %s55, 0
  %p58 = scmp.lt.s32.totalorder %s57, 0
  %s59 = scalar_select %p58, %s57, 0
  %s60 = smul.addr %s59, 8
  %s61 = scalar_lea.vmem %s1, %s60
  %s62 = sadd.s32 0, 0
  %p63 = scmp.lt.s32.totalorder %s62, 0
  %s64 = scalar_select %p63, %s62, 0
  %p65 = scmp.eq.s32.totalorder 0, 0
  // Predicated region
  $region10: #{_ranking_loss_impl.1} parent=0 // pred_check
    %p66 = pneg %p65
  $region11: #{_ranking_loss_impl.1} parent=0 // pred_check_branch
    %68 = sbr.rel (%p66) target = $region13
  $region12: #{_ranking_loss_impl.1} parent=0 // pred_region
    %vm69 = vcmask 7168
    %70 = vst.msk [vmem:[%s2] sm:$0xff] %vm69, 0.0
  $region13: #{_ranking_loss_impl.1} parent=0 // pred_fallthru
    _
  %v71 = vld [vmem:[%s51] sm:$0xff]
  %v72 = vld [vmem:[%s61] sm:$0xff]
  %v73 = vlaneseq
  %v74 = vand.u32 %v73, 127
  %75 = vset.pattern.permute.xlu0 0
  %76 = vperm.xlu0 %75, %v72
  %v77 = vpop.permute.xlu0 %76
  %vm78 = vcmp.eq.s32.totalorder %v74, %v77
  %v79 = vsel %vm78, %v71, 0.0
  %vm80 = vcmask 261120
  %v81 = vsel %vm80, %v79, 0.0
  %82 = vadd.xlane.f32.xlu0 %v81
  %v83 = vpop.xlane.xlu0 %82
  %v84 = vsel %vm80, %v71, -inf
  %85 = vmax.xlane.f32.xlu0 %v84
  %v86 = vpop.xlane.xlu0 %85
  %vm87 = vcmp.eq.f32.partialorder %v71, %v86
  %v88 = vsel %vm87, 1, 0
  %v89 = vcvt.s32.f32 %v88
  %v90 = vsel %vm80, %v89, 0.0
  %91 = vadd.xlane.f32.xlu0 %v90
  %v92 = vpop.xlane.xlu0 %91
  %v93 = vsel %vm87, -3.4028235e+38, %v71
  %v94 = vsel %vm80, %v93, -inf
  %95 = vmax.xlane.f32.xlu0 %v94
  %v96 = vpop.xlane.xlu0 %95
  %vm97 = vcmp.gt.f32.partialorder %v92, 1.5
  %v98 = vsel %vm97, %v86, %v96
  %vm99 = vcmp.eq.f32.partialorder %v83, %v86
  %vm100 = vcmp.ne.s32.totalorder %v72, 0
  %v101 = vsel %vm100, 1, 0
  %v102 = vcvt.s32.f32 %v101
  %v103 = vsub.f32 2.5, %v83
  %v104 = vmul.f32 %v103, 2.0
  %v105 = vmul.f32 %v104, 1.442695
  %v106 = vpow.pop %v105
  %v107 = vadd.f32 %v106, 1.0
  %v108 = vlog2.pop %v107
  %v109 = vmul.f32 %v108, 0.6931472
  %v110 = vsub.f32 %v83, 100.0
  %v111 = vmul.f32 %v110, 2.0
  %v112 = vmul.f32 %v111, 1.442695
  %v113 = vpow.pop %v112
  %v114 = vadd.f32 %v113, 1.0
  %v115 = vlog2.pop %v114
  %v116 = vmul.f32 %v115, 0.6931472
  %v117 = vadd.f32 %v109, %v116
  %v118 = vsel %vm99, %v98, %v86
  %v119 = vadd.f32 %v118, 0.5
  %v120 = vmul.f32 %v119, 2.0
  %v121 = vmul.f32 %v120, 1.442695
  %v122 = vpow.pop %v121
  %v123 = vadd.f32 %v122, 1.0
  %v124 = vlog2.pop %v123
  %v125 = vmul.f32 %v124, 0.6931472
  %v126 = vsub.f32 -100.0, %v118
  %v127 = vmul.f32 %v126, 2.0
  %v128 = vmul.f32 %v127, 1.442695
  %v129 = vpow.pop %v128
  %v130 = vadd.f32 %v129, 1.0
  %v131 = vlog2.pop %v130
  %v132 = vmul.f32 %v131, 0.6931472
  %v133 = vadd.f32 %v125, %v132
  %s134 = sadd.s32 0, 0
  %s135 = smul.u32 %s134, 8
  %v136 = vlaneseq
  %v137 = vshrl.u32 %v136, 7
  %v138 = vstv %s135
  %v139 = vadd.s32 %v138, %v137
  %v140 = vmul.f32 %v102, %v117
  %v141 = vadd.f32 %v140, %v133
  %v142 = vld [vmem:[%s2] sm:$0xff]
  %vm143 = vcmp.lt.s32.totalorder %v139, 8
  %v144 = vsel %vm143, %v141, 0.0
  %v145 = vadd.f32 %v142, %v144
  %vm146 = vcmask 7168
  %147 = vst.msk [vmem:[%s2] sm:$0xff] %vm146, %v145
  // Predicated region
  $region14: #{_ranking_loss_impl.1} parent=0 // pred_check
    _
  $region15: #{_ranking_loss_impl.1} parent=0 // pred_check_branch
    %149 = sbr.rel (0) target = $region17
  $region16: #{_ranking_loss_impl.1} parent=0 // pred_region
    _
  $region17: #{_ranking_loss_impl.1} parent=0 // pred_fallthru
    _
  // Predicated region
  $region18: #{_ranking_loss_impl.1} parent=0 // pred_check
    _
  $region19: #{_ranking_loss_impl.1} parent=0 // pred_check_branch
    %151 = sbr.rel (0) target = $region21
  $region20: #{_ranking_loss_impl.1} parent=0 // pred_region
    _
  $region21: #{_ranking_loss_impl.1} parent=0 // pred_fallthru
    _

</llo_original>
